<compile_context>
chip_gen: v7x
topology: tpu7x:2x2x1
jax: 0.10.0
libtpu: 0.0.40
codegen_flags: <defaults>
</compile_context>

<pallas_src>
import math
from typing import NamedTuple

import jax
import jax.numpy as jnp
from jax import lax
from jax.experimental import pallas as pl
from jax.experimental.pallas import tpu as pltpu

_INV_SQRT2 = 1.0 / math.sqrt(2.0)


# --------------------------------------------------------------------------
# Kernel
# --------------------------------------------------------------------------
def _geglu_kernel(x_ref, w_ref, b_ref, o_ref, acc_ref):
    """One (i, j, k) grid step.

    x_ref:   (bm, bk)         activation tile (native dtype, fed to MXU as-is)
    w_ref:   (bk, 2*bn)       fused [hidden | gate] weight tile, (K, N) layout
    b_ref:   (1, 2*bn)        fused [hidden | gate] bias tile
    o_ref:   (bm, bn)         output tile
    acc_ref: (bm, 2*bn) f32   accumulator scratch
    """
    k = pl.program_id(2)

    @pl.when(k == 0)
    def _init():
        # Fold the bias into the accumulator init (no epilogue bias add).
        acc_ref[...] = jnp.broadcast_to(
            b_ref[...].astype(jnp.float32), acc_ref.shape)

    # Single MXU matmul per grid step produces both halves (hidden | gate).
    acc_ref[...] += jnp.dot(x_ref[...], w_ref[...],
                            preferred_element_type=jnp.float32)

    @pl.when(k == pl.num_programs(2) - 1)
    def _epilogue():
        bn = o_ref.shape[1]
        acc = acc_ref[...]
        hidden = acc[:, :bn]
        gate = acc[:, bn:]
        # Exact (erf-based) GELU, matching torch.nn.functional.gelu default.
        gelu = 0.5 * gate * (1.0 + lax.erf(gate * _INV_SQRT2))
        o_ref[...] = (hidden * gelu).astype(o_ref.dtype)


# --------------------------------------------------------------------------
# One-time parameter preparation (hoist out of the per-step path)
# --------------------------------------------------------------------------
class GEGLUParams(NamedTuple):
    w_fused: jax.Array    # (k_pad, n_tiles * 2 * bn)
    b_fused: jax.Array    # (1, n_tiles * 2 * bn)
    dim_in: int
    dim_out: int
    bn: int               # output-tile width (per half)
    bk: int               # K-tile
    n_tiles: int
    k_pad: int


def _pick_block(dim, target, granule=128):
    """Return (block, padded_dim).

    Prefers the largest multiple-of-`granule` divisor of `dim` that is
    <= `target` (no padding needed); falls back to `target` with padding.
    """
    if dim <= target:
        return dim, dim
    base = max((target // granule) * granule, granule)
    d = base
    while d >= granule:
        if dim % d == 0:
            return d, dim
        d -= granule
    padded = ((dim + base - 1) // base) * base
    return base, padded


def prepare_geglu_params(weight, bias, *, tn=512, tk=512):
    """One-time re-layout of the PyTorch nn.Linear(dim_in, 2*dim_out) params.

    weight: (2*dim_out, dim_in)  rows [0:dim_out] = hidden half, rest = gate.
    bias:   (2*dim_out,)

    Produces a (K, N)-layout weight where, for each output tile j of width bn,
    the columns are ordered [hidden_j (bn) | gate_j (bn)], so the kernel can do
    one matmul per step and split the halves in the epilogue.
    Keep x and weight in the same dtype (mixed dtypes take a slower MXU path).
    """
    two_dout, dim_in = weight.shape
    assert two_dout % 2 == 0, two_dout
    assert bias.shape == (two_dout,), bias.shape
    dim_out = two_dout // 2

    bn, n_pad = _pick_block(dim_out, tn)
    bk, k_pad = _pick_block(dim_in, tk)
    n_tiles = n_pad // bn

    w3 = weight.reshape(2, dim_out, dim_in)      # [hidden, gate] x (out, in)
    b2 = bias.reshape(2, dim_out)
    if n_pad != dim_out or k_pad != dim_in:
        w3 = jnp.pad(w3, ((0, 0), (0, n_pad - dim_out), (0, k_pad - dim_in)))
    if n_pad != dim_out:
        b2 = jnp.pad(b2, ((0, 0), (0, n_pad - dim_out)))

    # (2, n_pad, k_pad) -> (k_pad, n_tiles, 2, bn) -> (k_pad, n_tiles*2*bn)
    w_fused = (w3.reshape(2, n_tiles, bn, k_pad)
                 .transpose(3, 1, 0, 2)
                 .reshape(k_pad, n_tiles * 2 * bn))
    b_fused = (b2.reshape(2, n_tiles, bn)
                 .transpose(1, 0, 2)
                 .reshape(1, n_tiles * 2 * bn))

    return GEGLUParams(w_fused, b_fused, dim_in, dim_out, bn, bk, n_tiles, k_pad)


# --------------------------------------------------------------------------
# Wrapper
# --------------------------------------------------------------------------
def geglu_pallas(x, params: GEGLUParams, *, tm=512,
                 vmem_limit_bytes=None, weight_buffers=2):
    """GEGLU forward with prepared params.

    x:  (..., dim_in) activations (channels-last), same dtype as params.w_fused.
    tm: M (token) tile target.  For v7x megacore, prefer configs where
        M/tm >= 2 and dim_out/bn >= 2 so both TensorCores get work.
    weight_buffers: pipeline depth for the weight stream (set 3 on v5e if the
        profile shows exposed DMA).
    """
    *lead, dim_in = x.shape
    assert dim_in == params.dim_in, (dim_in, params.dim_in)
    assert x.dtype == params.w_fused.dtype, (
        f"x dtype {x.dtype} != weight dtype {params.w_fused.dtype}; "
        "prepare params in the activation dtype.")

    m = int(math.prod(lead)) if lead else 1
    x2 = x.reshape(m, dim_in)

    if m <= tm:
        bm, m_pad = m, m
    else:
        bm = tm
        m_pad = ((m + tm - 1) // tm) * tm

    # Only M (cheap) and, rarely, K padding of x; the weight is never padded
    # per call (handled once in prepare_geglu_params).
    if m_pad != m or params.k_pad != dim_in:
        x2 = jnp.pad(x2, ((0, m_pad - m), (0, params.k_pad - dim_in)))

    bn, bk, n_tiles = params.bn, params.bk, params.n_tiles
    k_tiles = params.k_pad // bk
    grid = (m_pad // bm, n_tiles, k_tiles)

    w_spec_kwargs = {}
    if weight_buffers != 2:
        w_spec_kwargs["pipeline_mode"] = pl.Buffered(weight_buffers)

    out = pl.pallas_call(
        _geglu_kernel,
        out_shape=jax.ShapeDtypeStruct((m_pad, n_tiles * bn), x.dtype),
        grid_spec=pltpu.PrefetchScalarGridSpec(
            num_scalar_prefetch=0,
            grid=grid,
            in_specs=[
                pl.BlockSpec((bm, bk), lambda i, j, k: (i, k)),           # x
                pl.BlockSpec((bk, 2 * bn), lambda i, j, k: (k, j),        # fused W
                             **w_spec_kwargs),
                pl.BlockSpec((1, 2 * bn), lambda i, j, k: (0, j)),        # fused b
            ],
            out_specs=pl.BlockSpec((bm, bn), lambda i, j, k: (i, j)),
            scratch_shapes=[pltpu.VMEM((bm, 2 * bn), jnp.float32)],
        ),
        compiler_params=pltpu.CompilerParams(
            dimension_semantics=("parallel", "parallel", "arbitrary"),
            vmem_limit_bytes=vmem_limit_bytes,
        ),
    )(x2, params.w_fused, params.b_fused)

    out = out[:m, :params.dim_out]
    return out.reshape(*lead, params.dim_out)


def geglu_from_pytorch_layout(x, weight, bias, *, tm=512, tn=512, tk=512,
                              **kwargs):
    """Convenience: prep + kernel in one call.  In a real model, call
    prepare_geglu_params once at load time and reuse the result."""
    params = prepare_geglu_params(weight, bias, tn=tn, tk=tk)
    return geglu_pallas(x, params, tm=tm, **kwargs)


# --------------------------------------------------------------------------
# Reference + self-test
# --------------------------------------------------------------------------
def _reference_geglu(x, weight, bias):
    y = (jnp.dot(x.astype(jnp.float32), jnp.transpose(weight).astype(jnp.float32))
         + bias.astype(jnp.float32))
    hidden, gate = jnp.split(y, 2, axis=-1)
    gelu = 0.5 * gate * (1.0 + lax.erf(gate * _INV_SQRT2))
    return (hidden * gelu).astype(x.dtype)


if __name__ == "__main__":
    key = jax.random.PRNGKey(0)

    # --- Test 1: small f32 shapes (single block, full-extent tiles) ----------
    batch, seq, dim_in, dim_out = 2, 8, 32, 32
    kx, kw, kb, key = jax.random.split(key, 4)
    x = jax.random.normal(kx, (batch, seq, dim_in), dtype=jnp.float32)
    bound = 1.0 / math.sqrt(dim_in)
    weight = jax.random.uniform(kw, (2 * dim_out, dim_in), minval=-bound,
                                maxval=bound, dtype=jnp.float32)
    bias = jax.random.uniform(kb, (2 * dim_out,), minval=-bound, maxval=bound,
                              dtype=jnp.float32)

    params = prepare_geglu_params(weight, bias)           # default tn=tk=512
    out = jax.block_until_ready(geglu_pallas(x, params))
    ref = _reference_geglu(x.reshape(-1, dim_in), weight, bias).reshape(
        batch, seq, dim_out)
    assert out.shape == (batch, seq, dim_out), out.shape
    assert jnp.allclose(out, ref, atol=1e-5, rtol=1e-5), \
        float(jnp.max(jnp.abs(out - ref)))

    # --- Test 2: bf16, multi-tile (M, N, K) grid + M padding ------------------
    batch2, seq2, din2, dout2 = 2, 96, 512, 256
    kx, kw, kb, key = jax.random.split(key, 4)
    x2 = jax.random.normal(kx, (batch2, seq2, din2),
                           dtype=jnp.float32).astype(jnp.bfloat16)
    bound2 = 1.0 / math.sqrt(din2)
    w2 = jax.random.uniform(kw, (2 * dout2, din2), minval=-bound2, maxval=bound2,
                            dtype=jnp.float32).astype(jnp.bfloat16)
    b2 = jax.random.uniform(kb, (2 * dout2,), minval=-bound2, maxval=bound2,
                            dtype=jnp.float32).astype(jnp.bfloat16)

    params2 = prepare_geglu_params(w2, b2, tn=128, tk=256)   # grid = (2, 2, 2)
    out2 = jax.block_until_ready(geglu_pallas(x2, params2, tm=128))
    ref2 = _reference_geglu(x2.reshape(-1, din2), w2, b2).reshape(
        batch2, seq2, dout2)
    err = float(jnp.max(jnp.abs(out2.astype(jnp.float32) -
                                ref2.astype(jnp.float32))))
    assert out2.shape == (batch2, seq2, dout2), out2.shape
    assert err < 5e-2, err

    print("KERNEL_OK")
</pallas_src>

<mosaic_0001>
module attributes {stable_mosaic.version = 11 : i64} {
  func.func @_geglu_kernel(%arg0: i32, %arg1: i32, %arg2: i32, %arg3: memref<16x32xf32, #tpu.memory_space<vmem>>, %arg4: memref<32x64xf32, #tpu.memory_space<vmem>>, %arg5: memref<1x64xf32, #tpu.memory_space<vmem>>, %arg6: memref<16x32xf32, #tpu.memory_space<vmem>>, %arg7: memref<16x64xf32, #tpu.memory_space<vmem>>) attributes {dimension_semantics = [#tpu.dimension_semantics<parallel>, #tpu.dimension_semantics<parallel>, #tpu.dimension_semantics<arbitrary>], iteration_bounds = array<i64: 1, 1, 1>, scalar_prefetch = 0 : i64, scratch_operands = 1 : i64, tpu.core_type = #tpu.core_type<tc>, window_params = [{transform_indices = @transform_0, window_bounds = array<i64: 16, 32>}, {transform_indices = @transform_1, window_bounds = array<i64: 32, 64>}, {transform_indices = @transform_2, window_bounds = array<i64: 1, 64>}, {transform_indices = @transform_3, window_bounds = array<i64: 16, 32>}]} {
    %c0_i32 = arith.constant 0 : i32
    %0 = arith.cmpi eq, %arg2, %c0_i32 : i32
    %1 = arith.extui %0 : i1 to i32
    %c0_i32_0 = arith.constant 0 : i32
    %2 = arith.cmpi ne, %1, %c0_i32_0 : i32
    scf.if %2 {
      %c0_10 = arith.constant 0 : index
      %c0_11 = arith.constant 0 : index
      %12 = vector.load %arg5[%c0_10, %c0_11] : memref<1x64xf32, #tpu.memory_space<vmem>>, vector<1x64xf32>
      %13 = vector.shape_cast %12 : vector<1x64xf32> to vector<1x64xf32>
      %14 = vector.broadcast %13 : vector<1x64xf32> to vector<16x64xf32>
      %c0_12 = arith.constant 0 : index
      %c0_13 = arith.constant 0 : index
      %15 = vector.load %arg7[%c0_12, %c0_13] : memref<16x64xf32, #tpu.memory_space<vmem>>, vector<16x64xf32>
      tpu.vector_store %arg7[%c0_12, %c0_13], %14 {strides = array<i32>} : memref<16x64xf32, #tpu.memory_space<vmem>>, vector<16x64xf32>,
    } else {
    }
    %c0 = arith.constant 0 : index
    %c0_1 = arith.constant 0 : index
    %3 = vector.load %arg7[%c0, %c0_1] : memref<16x64xf32, #tpu.memory_space<vmem>>, vector<16x64xf32>
    %c0_2 = arith.constant 0 : index
    %c0_3 = arith.constant 0 : index
    %4 = vector.load %arg3[%c0_2, %c0_3] : memref<16x32xf32, #tpu.memory_space<vmem>>, vector<16x32xf32>
    %c0_4 = arith.constant 0 : index
    %c0_5 = arith.constant 0 : index
    %5 = vector.load %arg4[%c0_4, %c0_5] : memref<32x64xf32, #tpu.memory_space<vmem>>, vector<32x64xf32>
    %cst = arith.constant dense<0.000000e+00> : vector<16x64xf32>
    %6 = tpu.matmul %4, %5, %cst {dimension_numbers = #tpu.dot_dimension_numbers<[1], [0], [0], [1], [0, 0, 1, 1], [], []>} : vector<16x32xf32>, vector<32x64xf32>, vector<16x64xf32> -> vector<16x64xf32>
    %7 = arith.addf %3, %6 : vector<16x64xf32>
    %c0_6 = arith.constant 0 : index
    %c0_7 = arith.constant 0 : index
    %8 = vector.load %arg7[%c0_6, %c0_7] : memref<16x64xf32, #tpu.memory_space<vmem>>, vector<16x64xf32>
    tpu.vector_store %arg7[%c0_6, %c0_7], %7 {strides = array<i32>} : memref<16x64xf32, #tpu.memory_space<vmem>>, vector<16x64xf32>,
    %c0_i32_8 = arith.constant 0 : i32
    %9 = arith.cmpi eq, %arg2, %c0_i32_8 : i32
    %10 = arith.extui %9 : i1 to i32
    %c0_i32_9 = arith.constant 0 : i32
    %11 = arith.cmpi ne, %10, %c0_i32_9 : i32
    scf.if %11 {
      %c0_10 = arith.constant 0 : index
      %c0_11 = arith.constant 0 : index
      %12 = vector.load %arg7[%c0_10, %c0_11] : memref<16x64xf32, #tpu.memory_space<vmem>>, vector<16x64xf32>
      %13 = vector.extract_strided_slice %12 {offsets = [0, 0], sizes = [16, 32], strides = [1, 1]} : vector<16x64xf32> to vector<16x32xf32>
      %14 = vector.extract_strided_slice %12 {offsets = [0, 32], sizes = [16, 32], strides = [1, 1]} : vector<16x64xf32> to vector<16x32xf32>
      %cst_12 = arith.constant 5.000000e-01 : f32
      %15 = vector.broadcast %cst_12 : f32 to vector<16x32xf32>
      %16 = arith.mulf %15, %14 : vector<16x32xf32>
      %cst_13 = arith.constant 0.707106769 : f32
      %17 = vector.broadcast %cst_13 : f32 to vector<16x32xf32>
      %18 = arith.mulf %14, %17 : vector<16x32xf32>
      %19 = math.erf %18 : vector<16x32xf32>
      %cst_14 = arith.constant 1.000000e+00 : f32
      %20 = vector.broadcast %cst_14 : f32 to vector<16x32xf32>
      %21 = arith.addf %20, %19 : vector<16x32xf32>
      %22 = arith.mulf %16, %21 : vector<16x32xf32>
      %23 = arith.mulf %13, %22 : vector<16x32xf32>
      %c0_15 = arith.constant 0 : index
      %c0_16 = arith.constant 0 : index
      %24 = vector.load %arg6[%c0_15, %c0_16] : memref<16x32xf32, #tpu.memory_space<vmem>>, vector<16x32xf32>
      tpu.vector_store %arg6[%c0_15, %c0_16], %23 {strides = array<i32>} : memref<16x32xf32, #tpu.memory_space<vmem>>, vector<16x32xf32>,
    } else {
    }
    return
  }
  func.func @transform_0(%arg0: i32, %arg1: i32, %arg2: i32) -> (i32, i32) {
    %c0_i32 = arith.constant 0 : i32
    return %arg0, %arg2 : i32, i32
  }
  func.func @transform_1(%arg0: i32, %arg1: i32, %arg2: i32) -> (i32, i32) {
    %c0_i32 = arith.constant 0 : i32
    return %arg2, %arg1 : i32, i32
  }
  func.func @transform_2(%arg0: i32, %arg1: i32, %arg2: i32) -> (i32, i32) {
    %c0_i32 = arith.constant 0 : i32
    %c0_i32_0 = arith.constant 0 : i32
    return %c0_i32, %arg1 : i32, i32
  }
  func.func @transform_3(%arg0: i32, %arg1: i32, %arg2: i32) -> (i32, i32) {
    %c0_i32 = arith.constant 0 : i32
    return %arg0, %arg1 : i32, i32
  }
}

</mosaic_0001>

<llo_original>
// kernel: tpu_custom_call.1
$region0: #{tpu_custom_call.1}
  #allocation0 [shape = 'u32[]', space=smem, size = 0x4, offset = 0x4, fixed_abs, tag = 'smem constant byte address 0x4 - core index']
  #allocation1 [shape = 'u32[144,128]{1,0:T(1,128)}', space=vmem, size = 0x12000, scoped, tag = 'internal scratch']
  #allocation2 [shape = 'f32[16,64]{1,0:T(8,128)}', space=vmem, size = 0x2000, scoped, tag = 'scratch operand']
  %s0 = inlined_call_operand.hbm [shape: f32[16,32], index: 0, kind: input, shape index: {}]
  %s1 = inlined_call_operand.hbm [shape: f32[32,64], index: 1, kind: input, shape index: {}]
  %s2 = inlined_call_operand.vmem [shape: f32[1,64], index: 2, kind: input, shape index: {}]
  %s3 = inlined_call_operand.hbm [shape: f32[16,32], index: 3, kind: output, shape index: {}]
  %s4 = sld [smem:[#allocation0]]
  $region38: #{tpu_custom_call.1} parent=0
    _
  %s6 = ssub.s32 1, %s4
  %s7 = scalar_select 0, %s6, %s4
  $region1: #{tpu_custom_call.1} parent=0
    #allocation3 [shape = 'u8[8192]{0}', space=vmem, size = 0x2000, scoped, tag = 'input window, operand 0, single buffered']
    #allocation4 [shape = 's32[1]{0}', space=sflag, size = 0x4, scoped, tag = 'scoped memory for tpu_custom_call.1']
    #allocation5 [shape = 's32[1]{0}', space=sflag, size = 0x4, scoped, tag = 'scoped memory for tpu_custom_call.1']
    #allocation6 [shape = 'u8[16384]{0}', space=vmem, size = 0x4000, scoped, tag = 'input window, operand 1, single buffered']
    #allocation7 [shape = 's32[1]{0}', space=sflag, size = 0x4, scoped, tag = 'scoped memory for tpu_custom_call.1']
    #allocation8 [shape = 'u8[8192]{0}', space=vmem, size = 0x2000, scoped, tag = 'output window, operand 0, single buffered']
    %8 = vsyncpa [#allocation4], 0
    %9 = vsyncpa [#allocation7], 0
    %10 = vsyncpa [#allocation5], 0
    // Predicated region
    $region2: #{tpu_custom_call.1} parent=1 // pred_check
      _
    $region3: #{tpu_custom_call.1} parent=1 // pred_check_branch
      %12 = sbr.rel (0) target = $region5
    $region4: #{tpu_custom_call.1} parent=1 // pred_region
      %s14 = ssub.s32 256, 256
      %15 = vsyncadd [#allocation4], %s14
      %s16 = sshll.u32 [#allocation3], 4
      %s17 = int_to_ptr.vmem [resolvable:$true] %s16
      %22 = dma.hbm_to_vmem [thread:$0]  %s0, 256, %s17, [#allocation4], 128, 128, 8
    $region5: #{tpu_custom_call.1} parent=1 // pred_fallthru
      _
    // Predicated region
    $region6: #{tpu_custom_call.1} parent=1 // pred_check
      _
    $region7: #{tpu_custom_call.1} parent=1 // pred_check_branch
      %24 = sbr.rel (0) target = $region9
    $region8: #{tpu_custom_call.1} parent=1 // pred_region
      %s26 = ssub.s32 512, 512
      %27 = vsyncadd [#allocation7], %s26
      %s28 = sshll.u32 [#allocation6], 4
      %s29 = int_to_ptr.vmem [resolvable:$true] %s28
      %34 = dma.hbm_to_vmem [thread:$0]  %s1, 512, %s29, [#allocation7], 128, 128, 8
    $region9: #{tpu_custom_call.1} parent=1 // pred_fallthru
      _
    // Predicated region
    $region10: #{tpu_custom_call.1} parent=1 // pred_check
      _
    $region11: #{tpu_custom_call.1} parent=1 // pred_check_branch
      %36 = sbr.rel (0) target = $region13
    $region12: #{tpu_custom_call.1} parent=1 // pred_region
      _
    $region13: #{tpu_custom_call.1} parent=1 // pred_fallthru
      _
    // Predicated region
    $region14: #{tpu_custom_call.1} parent=1 // pred_check
      _
    $region15: #{tpu_custom_call.1} parent=1 // pred_check_branch
      %38 = sbr.rel (0) target = $region17
    $region16: #{tpu_custom_call.1} parent=1 // pred_region
      %39 = dma.done [#allocation4], 256
    $region17: #{tpu_custom_call.1} parent=1 // pred_fallthru
      _
    // Predicated region
    $region18: #{tpu_custom_call.1} parent=1 // pred_check
      _
    $region19: #{tpu_custom_call.1} parent=1 // pred_check_branch
      %41 = sbr.rel (0) target = $region21
    $region20: #{tpu_custom_call.1} parent=1 // pred_region
      %42 = dma.done [#allocation7], 512
    $region21: #{tpu_custom_call.1} parent=1 // pred_fallthru
      _
    %p43 = scmp.eq.s32.totalorder 0, 0
    // Predicated region
    $region22: #{tpu_custom_call.1} parent=1 // pred_check
      %p44 = pneg %p43
    $region23: #{tpu_custom_call.1} parent=1 // pred_check_branch
      %46 = sbr.rel (%p44) target = $region25
    $region24: #{tpu_custom_call.1} parent=1 // pred_region
      %v47 = vld [vmem:[%s2] sm:$0x1]
      %v49 = vlaneseq
      %v50 = vshrl.u32 %v49, 7
      %v51 = vsub.s32 0, %v50
      %v52 = vrot.slane %v47, %v51
      %vm54 = vcmask 523264
      %55 = vst.msk [vmem:[#allocation2] sm:$0xff] %vm54, %v52
      %56 = vst.msk [vmem:[#allocation2 + $0x8] sm:$0xff] %vm54, %v52
    $region25: #{tpu_custom_call.1} parent=1 // pred_fallthru
      _
    %v57 = vld [vmem:[#allocation2] sm:$0xff]
    %v58 = vld [vmem:[#allocation2 + $0x8] sm:$0xff]
    %v59 = vld [vmem:[#allocation3] sm:$0xff]
    %v60 = vld [vmem:[#allocation3 + $0x8] sm:$0xff]
    %v61 = vld [vmem:[#allocation6] sm:$0xff]
    %v62 = vld [vmem:[#allocation6 + $0x8] sm:$0xff]
    %v63 = vld [vmem:[#allocation6 + $0x10] sm:$0xff]
    %v64 = vld [vmem:[#allocation6 + $0x18] sm:$0xff]
    %vm65 = vcmask 261120
    %v67 = vsel %vm65, %v59, 0
    %v70 = vsel %vm65, %v60, 0
    %72 = vmatprep.subr.mxu0 0.0
    %73 = vmatpush1.msra.mxu0 %v61
    %74 = vmatprep.subr.mxu0 0.0
    %75 = vmatpush1.msra.mxu0 %v62
    %76 = vmatprep.subr.mxu0 0.0
    %77 = vmatpush1.msra.mxu0 %v63
    %78 = vmatprep.subr.mxu0 0.0
    %79 = vmatpush1.msra.mxu0 %v64
    %80 = vmatprep.subr.mxu0 0.0
    %81 = vmatpush1.msra.mxu0 0.0
    %82 = vmatprep.subr.mxu0 0.0
    %83 = vmatpush1.msra.mxu0 0.0
    %84 = vmatprep.subr.mxu0 0.0
    %85 = vmatpush1.msra.mxu0 0.0
    %86 = vmatprep.subr.mxu0 0.0
    %87 = vmatpush1.msra.mxu0 0.0
    %88 = vmatprep.subr.mxu0 0.0
    %89 = vmatpush1.msra.mxu0 0.0
    %90 = vmatprep.subr.mxu0 0.0
    %91 = vmatpush1.msra.mxu0 0.0
    %92 = vmatprep.subr.mxu0 0.0
    %93 = vmatpush1.msra.mxu0 0.0
    %94 = vmatprep.subr.mxu0 0.0
    %95 = vmatpush1.msra.mxu0 0.0
    %96 = vmatprep.subr.mxu0 0.0
    %97 = vmatpush1.msra.mxu0 0.0
    %98 = vmatprep.subr.mxu0 0.0
    %99 = vmatpush1.msra.mxu0 0.0
    %100 = vmatprep.subr.mxu0 0.0
    %101 = vmatpush1.msra.mxu0 0.0
    %102 = vmatprep.subr.mxu0 0.0
    %103 = vmatpush1.msra.mxu0 0.0
    %104 = vmatprep.subr.mxu0 0.0
    %105 = vmatpush1.msra.mxu0 0.0
    %106 = vmatprep.subr.mxu0 0.0
    %107 = vmatpush1.msra.mxu0 0.0
    %108 = vmatprep.subr.mxu0 0.0
    %109 = vmatpush1.msra.mxu0 0.0
    %110 = vmatprep.subr.mxu0 0.0
    %111 = vmatpush1.msra.mxu0 0.0
    %112 = vmatprep.subr.mxu0 0.0
    %113 = vmatpush1.msra.mxu0 0.0
    %114 = vmatprep.subr.mxu0 0.0
    %115 = vmatpush1.msra.mxu0 0.0
    %116 = vmatprep.subr.mxu0 0.0
    %117 = vmatpush1.msra.mxu0 0.0
    %118 = vmatprep.subr.mxu0 0.0
    %119 = vmatpush1.msra.mxu0 0.0
    %120 = vmatprep.subr.mxu0 0.0
    %121 = vmatpush1.msra.mxu0 0.0
    %122 = vmatprep.subr.mxu0 0.0
    %123 = vmatpush1.msra.mxu0 0.0
    %124 = vmatprep.subr.mxu0 0.0
    %125 = vmatpush1.msra.mxu0 0.0
    %126 = vmatprep.subr.mxu0 0.0
    %127 = vmatpush1.msra.mxu0 0.0
    %128 = vmatprep.subr.mxu0 0.0
    %129 = vmatpush1.msra.mxu0 0.0
    %130 = vmatprep.subr.mxu0 0.0
    %131 = vmatpush1.msra.mxu0 0.0
    %132 = vmatprep.subr.mxu0 0.0
    %133 = vmatpush1.msra.mxu0 0.0
    %134 = vmatprep.subr.mxu0 0.0
    %135 = vmatpush1.msra.mxu0 0.0
    %136 = vmatprep.mubr.f32.mxu0 0.0
    %137 = vmatmul.mubr.f32.gmra.mrb[0].mxu0 %v67
    %v138 = vpop.f32.mrb[0].mxu0
    %v139 = vadd.f32 0.0, %v138
    %v140 = vpop.f32.mrb[0].mxu0
    %141 = vmatprep.mubr.f32.mxu0 0.0
    %142 = vmatmul.mubr.f32.gmra.mrb[0].mxu0 %v70
    %v143 = vpop.f32.mrb[0].mxu0
    %v144 = vadd.f32 0.0, %v143
    %v145 = vpop.f32.mrb[0].mxu0
    %146 = vdwg.mxu0
    %v147 = vadd.f32 %v57, %v139
    %v148 = vadd.f32 %v58, %v144
    %vm149 = vcmask 523264
    %150 = vst.msk [vmem:[#allocation2] sm:$0xff] %vm149, %v147
    %151 = vst.msk [vmem:[#allocation2 + $0x8] sm:$0xff] %vm149, %v148
    // Predicated region
    $region26: #{tpu_custom_call.1} parent=1 // pred_check
      %p152 = pneg %p43
    $region27: #{tpu_custom_call.1} parent=1 // pred_check_branch
      %154 = sbr.rel (%p152) target = $region29
    $region28: #{tpu_custom_call.1} parent=1 // pred_region
      %v155 = vld [vmem:[#allocation2] sm:$0xff]
      %v156 = vld [vmem:[#allocation2 + $0x8] sm:$0xff]
      %v157 = vmul.f32 %v155, 0.5
      %v158 = vmul.f32 %v156, 0.5
      %v159 = vmul.f32 %v155, 0.70710677
      %v160 = vmul.f32 %v156, 0.70710677
      %v161 = verf.f32.pop %v159
      %v162 = verf.f32.pop %v160
      %v163 = vadd.f32 %v161, 1.0
      %v164 = vadd.f32 %v162, 1.0
      %v165 = vmul.f32 %v157, %v163
      %v166 = vmul.f32 %v158, %v164
      %169 = vrot.lane.b32.xlu0 %v165, 96
      %v170 = vpop.permute.xlu0 %169
      %171 = vrot.lane.b32.xlu0 %v166, 96
      %v172 = vpop.permute.xlu0 %171
      %v175 = vmul.f32 %v155, %v170
      %v176 = vmul.f32 %v156, %v172
      %177 = vst.msk [vmem:[#allocation8] sm:$0xff] %vm65, %v175
      %178 = vst.msk [vmem:[#allocation8 + $0x8] sm:$0xff] %vm65, %v176
    $region29: #{tpu_custom_call.1} parent=1 // pred_fallthru
      _
    // Predicated region
    $region30: #{tpu_custom_call.1} parent=1 // pred_check
      _
    $region31: #{tpu_custom_call.1} parent=1 // pred_check_branch
      %180 = sbr.rel (0) target = $region33
    $region32: #{tpu_custom_call.1} parent=1 // pred_region
      %s182 = ssub.s32 256, 256
      %183 = vsyncadd [#allocation5], %s182
      %s184 = sshll.u32 [#allocation8], 4
      %s185 = int_to_ptr.vmem [resolvable:$true] %s184
      %190 = dma.vmem_to_hbm [thread:$0]  %s185, 256, %s3, [#allocation5], 128, 128, 8
    $region33: #{tpu_custom_call.1} parent=1 // pred_fallthru
      _
    // Predicated region
    $region34: #{tpu_custom_call.1} parent=1 // pred_check
      _
    $region35: #{tpu_custom_call.1} parent=1 // pred_check_branch
      %192 = sbr.rel (0) target = $region37
    $region36: #{tpu_custom_call.1} parent=1 // pred_region
      %193 = dma.done [#allocation5], 256
    $region37: #{tpu_custom_call.1} parent=1 // pred_fallthru
      _
    %194 = vsyncpa [#allocation4], 1
    %195 = vsyncpa [#allocation7], 1
    %196 = vsyncpa [#allocation5], 1

</llo_original>
